<compile_context>
chip_gen: v7x
topology: tpu7x:2x2x1
jax: 0.10.0
libtpu: 0.0.40
codegen_flags: <defaults>
</compile_context>

<pallas_src>
import math
import functools

import jax
import jax.numpy as jnp
from jax.experimental import pallas as pl
from jax.experimental.pallas import tpu as pltpu


# ----------------------------------------------------------------------------
# Pallas kernel: one grid step per RGCN layer.
# ----------------------------------------------------------------------------
def _don_kernel(num_bases, n_pad,
                h0_ref,        # (H, Np)          bf16  embedded + PE, transposed
                a_ref,         # (1, Np, B*Np)    bf16  per-layer basis-combined adj^T
                w_ref,         # (1, B+1, H, H)   bf16  [root^T, basis0^T, basis1^T]
                b_ref,         # (1, H, 1)        f32   bias column
                unmask_ref,    # (1, Np)          f32
                out_ref,       # (1, Np)          f32
                h_ref):        # scratch (H, Np)  bf16  activations carried over layers
    f32, bf16 = jnp.float32, jnp.bfloat16
    l = pl.program_id(0)
    last = pl.num_programs(0) - 1

    @pl.when(l == 0)
    def _():
        h_ref[...] = h0_ref[...]

    h = h_ref[...]                                                   # (H, Np) bf16
    a = a_ref[0]                                                     # (Np, B*Np)
    bias = b_ref[0]                                                  # (H, 1) f32

    # root term + bias:  (W_root^T @ h^T) + b
    out = jnp.dot(w_ref[0, 0], h, preferred_element_type=f32) + bias  # (H, Np)
    # aggregation for all bases in one MXU pass: msg[:, b*Np:(b+1)*Np] = (A_b h)^T
    msg = jnp.dot(h, a, preferred_element_type=f32)                   # (H, B*Np)
    for b in range(num_bases):                                        # static (B=2)
        out = out + jnp.dot(w_ref[0, 1 + b],
                            msg[:, b * n_pad:(b + 1) * n_pad].astype(bf16),
                            preferred_element_type=f32)

    @pl.when(l < last)
    def _():
        h_ref[...] = out.astype(bf16)

    @pl.when(l == last)
    def _():
        # final layer weights are zero-padded: only row 0 carries the logit.
        logit = out[0:1, :]                                           # (1, Np)
        unmask = unmask_ref[...]                                      # (1, Np)
        masked = jnp.where(unmask > 0, logit, jnp.full_like(logit, -1e30))
        m = jnp.max(masked, axis=1, keepdims=True)                    # (1, 1)
        e = jnp.exp(masked - m)                                       # masked -> 0
        denom = jnp.sum(e, axis=1, keepdims=True)                     # >= 1
        out_ref[...] = e / denom


# ----------------------------------------------------------------------------
# Parameters (basis + comp kept separate so the glue can fold comp into adj).
# ----------------------------------------------------------------------------
def init_params(key, num_node_types_total, num_relations, hidden_dim,
                out_channels, num_bases=2):
    ks = jax.random.split(key, 16)

    def glorot(k, shape):
        fan_in, fan_out = shape[-2], shape[-1]
        lim = math.sqrt(6.0 / (fan_in + fan_out))
        return jax.random.uniform(k, shape, jnp.float32, -lim, lim)

    params = {"emb": jax.random.normal(ks[0], (num_node_types_total, hidden_dim),
                                       jnp.float32)}
    dims = [(hidden_dim, hidden_dim),
            (hidden_dim, hidden_dim),
            (hidden_dim, out_channels)]
    for li, (din, dout) in enumerate(dims, start=1):
        kb, kc, kr = ks[1 + 3 * (li - 1): 4 + 3 * (li - 1)]
        params[f"basis{li}"] = glorot(kb, (num_bases, din, dout))      # B_b
        params[f"comp{li}"] = glorot(kc, (num_relations, num_bases))   # a_{r,b}
        params[f"w{li}_root"] = glorot(kr, (din, dout))
        params[f"b{li}"] = jnp.zeros((1, dout), jnp.float32)
    return params


# ----------------------------------------------------------------------------
# Glue: embedding gather, PE, dense mean-normalized adjacency, basis folding,
# transposed (feature-major) layout.  Sparse scatter/gather stays in XLA.
# ----------------------------------------------------------------------------
def _prepare_inputs(node_types, edge_index, edge_type, node_order, params,
                    num_relations, num_bases, hidden_dim):
    f32, bf16 = jnp.float32, jnp.bfloat16
    N = node_types.shape[0]
    H = hidden_dim
    assert H % 8 == 0
    n_pad = ((N + 127) // 128) * 128      # nodes live on the lane axis
    R = num_relations
    L = 3

    # Embedding lookup + positional encoding (out_channels==1 -> scalar
    # sin(t+1) broadcast-added to the t-th absorbed node's hidden row).
    h0 = jnp.take(params["emb"], node_types, axis=0)                   # (N, H)
    if len(node_order) > 0:
        pe_vals = jnp.sin(jnp.arange(1, len(node_order) + 1, dtype=f32))
        h0 = h0.at[jnp.asarray(node_order)].add(pe_vals[:, None])
    h0 = jnp.pad(h0, ((0, n_pad - N), (0, 0))).T                       # (H, Np)

    # Dense per-relation adjacency, mean aggregation (PyG RGCNConv default),
    # flow source->target: adj[r, dst, src].
    counts = jnp.zeros((R, n_pad, n_pad), f32)
    counts = counts.at[edge_type, edge_index[1], edge_index[0]].add(1.0)
    deg = counts.sum(axis=-1, keepdims=True)
    adj = jnp.where(deg > 0, counts / jnp.maximum(deg, 1.0), 0.0)

    # unmask: 1.0 = node contributes to the denominator / keeps its output.
    if 0 < len(node_order) < N:
        unmask = jnp.ones((N,), f32).at[jnp.asarray(node_order)].set(0.0)
    else:
        unmask = jnp.ones((N,), f32)      # matches both branches of the module
    unmask = jnp.pad(unmask, (0, n_pad - N))[None, :]                  # (1, Np)

    # Per-layer basis-combined, transposed adjacency stacked along columns:
    #   a_cat[src, b*Np + dst] = (sum_r comp[r,b] A_r)[dst, src]
    a_layers, w_layers, b_layers = [], [], []
    for li in (1, 2, 3):
        a_tilde = jnp.einsum("rb,rij->bij", params[f"comp{li}"], adj)  # (B,Np,Np)
        a_cat = jnp.transpose(a_tilde, (2, 0, 1)).reshape(n_pad, num_bases * n_pad)
        a_layers.append(a_cat)

        wr, wb, bias = params[f"w{li}_root"], params[f"basis{li}"], params[f"b{li}"]
        d_out = wr.shape[1]
        # transposed weights, zero-padded to (H, H) so every layer is uniform
        wr_T = jnp.zeros((H, H), f32).at[:d_out, :].set(wr.T)
        wb_T = jnp.zeros((num_bases, H, H), f32).at[:, :d_out, :].set(
            jnp.transpose(wb, (0, 2, 1)))
        w_layers.append(jnp.concatenate([wr_T[None], wb_T], axis=0))   # (B+1,H,H)
        b_layers.append(jnp.zeros((H, 1), f32).at[:d_out, 0].set(bias[0]))

    return {
        "h0": h0.astype(bf16),
        "a_stack": jnp.stack(a_layers).astype(bf16),          # (L, Np, B*Np)
        "w_stack": jnp.stack(w_layers).astype(bf16),           # (L, B+1, H, H)
        "bias_stack": jnp.stack(b_layers),                     # (L, H, 1) f32
        "unmask": unmask,                                      # (1, Np) f32
        "n_pad": n_pad,
        "num_layers": L,
    }


def don_forward(node_types, edge_index, edge_type, node_order, params,
                hidden_dim, out_channels, num_relations, num_bases=2):
    assert out_channels == 1, "final-layer padding assumes out_channels == 1"
    N = node_types.shape[0]
    H = hidden_dim
    prep = _prepare_inputs(node_types, edge_index, edge_type, node_order,
                           params, num_relations, num_bases, hidden_dim)
    n_pad, L = prep["n_pad"], prep["num_layers"]
    B = num_bases

    # VMEM budget from n_pad (adjacency block double-buffered by the pipeline),
    # capped below v7x's 64 MiB physical VMEM.
    a_bytes = 2 * (n_pad * B * n_pad * 2)                      # 2 bufs, bf16
    misc = 4 * H * n_pad * 2 + (2 << 20)
    vmem_limit = int(min(max(a_bytes + misc, 16 << 20), 56 << 20))

    out = pl.pallas_call(
        functools.partial(_don_kernel, num_bases, n_pad),
        out_shape=jax.ShapeDtypeStruct((1, n_pad), jnp.float32),
        grid_spec=pltpu.PrefetchScalarGridSpec(
            num_scalar_prefetch=0,
            grid=(L,),
            in_specs=[
                pl.BlockSpec((H, n_pad), lambda l: (0, 0)),            # h0
                pl.BlockSpec((1, n_pad, B * n_pad), lambda l: (l, 0, 0)),  # adj
                pl.BlockSpec((1, B + 1, H, H), lambda l: (l, 0, 0, 0)),    # weights
                pl.BlockSpec((1, H, 1), lambda l: (l, 0, 0)),              # bias
                pl.BlockSpec((1, n_pad), lambda l: (0, 0)),                # unmask
            ],
            out_specs=pl.BlockSpec((1, n_pad), lambda l: (0, 0)),
            scratch_shapes=[pltpu.VMEM((H, n_pad), jnp.bfloat16)],
        ),
        compiler_params=pltpu.CompilerParams(
            dimension_semantics=("arbitrary",),
            vmem_limit_bytes=vmem_limit),
    )(prep["h0"], prep["a_stack"], prep["w_stack"], prep["bias_stack"],
      prep["unmask"])
    return out[0, :N][:, None]                                 # (N, out_channels)


# ----------------------------------------------------------------------------
# Pure-JAX reference mirroring the kernel math (same layout / bf16 casts).
# ----------------------------------------------------------------------------
def don_reference(prep, num_bases):
    f32, bf16 = jnp.float32, jnp.bfloat16
    n_pad, L = prep["n_pad"], prep["num_layers"]
    h = prep["h0"]
    out = None
    for l in range(L):
        a = prep["a_stack"][l]
        w = prep["w_stack"][l]
        bias = prep["bias_stack"][l]
        out = jnp.dot(w[0], h, preferred_element_type=f32) + bias
        msg = jnp.dot(h, a, preferred_element_type=f32)
        for b in range(num_bases):
            out = out + jnp.dot(w[1 + b],
                                msg[:, b * n_pad:(b + 1) * n_pad].astype(bf16),
                                preferred_element_type=f32)
        h = out.astype(bf16)
    logit = out[0:1, :]
    unmask = prep["unmask"]
    masked = jnp.where(unmask > 0, logit, jnp.full_like(logit, -1e30))
    m = jnp.max(masked, axis=1, keepdims=True)
    e = jnp.exp(masked - m)
    return e / jnp.sum(e, axis=1, keepdims=True)               # (1, Np)


# ----------------------------------------------------------------------------
if __name__ == "__main__":
    key = jax.random.PRNGKey(0)
    N, HIDDEN, OUT_C = 8, 32, 1
    num_node_types, num_edge_types = 4, 3
    T = num_node_types + 1            # +1 as in the module __init__
    R = num_edge_types + 2            # +2 as in the module __init__
    E = 16
    NUM_BASES = 2

    k1, k2, k3, kp = jax.random.split(key, 4)
    node_types = jax.random.randint(k1, (N,), 0, T)          # G.x.squeeze().long()
    edge_index = jax.random.randint(k2, (2, E), 0, N)        # G.edge_index
    edge_type = jax.random.randint(k3, (E,), 0, R)           # G.edge_attr
    node_order = [0, 3]                                      # absorbed nodes so far

    params = init_params(kp, T, R, HIDDEN, OUT_C, NUM_BASES)

    out = don_forward(node_types, edge_index, edge_type, node_order, params,
                      HIDDEN, OUT_C, R, NUM_BASES)
    out = jax.block_until_ready(out)

    prep = _prepare_inputs(node_types, edge_index, edge_type, node_order,
                           params, R, NUM_BASES, HIDDEN)
    ref = don_reference(prep, NUM_BASES)[0, :N][:, None]

    assert out.shape == (N, OUT_C)
    assert bool(jnp.all(jnp.isfinite(out)))
    if not jnp.allclose(out, ref, rtol=2e-2, atol=2e-3):
        raise AssertionError("Pallas kernel output mismatch vs reference")
    print("KERNEL_OK")
</pallas_src>

<mosaic_0001>
module attributes {stable_mosaic.version = 11 : i64} {
  func.func @_don_kernel(%arg0: i32, %arg1: memref<32x128xbf16, #tpu.memory_space<vmem>>, %arg2: memref<1x128x256xbf16, #tpu.memory_space<vmem>>, %arg3: memref<1x3x32x32xbf16, #tpu.memory_space<vmem>>, %arg4: memref<1x32x1xf32, #tpu.memory_space<vmem>>, %arg5: memref<1x128xf32, #tpu.memory_space<vmem>>, %arg6: memref<1x128xf32, #tpu.memory_space<vmem>>, %arg7: memref<32x128xbf16, #tpu.memory_space<vmem>>) attributes {dimension_semantics = [#tpu.dimension_semantics<arbitrary>], iteration_bounds = array<i64: 3>, scalar_prefetch = 0 : i64, scratch_operands = 1 : i64, tpu.core_type = #tpu.core_type<tc>, window_params = [{pipeline_mode = #tpu.pipeline_mode<synchronous>, transform_indices = @transform_0, window_bounds = array<i64: 32, 128>}, {transform_indices = @transform_1, window_bounds = array<i64: 1, 128, 256>}, {transform_indices = @transform_2, window_bounds = array<i64: 1, 3, 32, 32>}, {transform_indices = @transform_3, window_bounds = array<i64: 1, 32, 1>}, {pipeline_mode = #tpu.pipeline_mode<synchronous>, transform_indices = @transform_4, window_bounds = array<i64: 1, 128>}, {pipeline_mode = #tpu.pipeline_mode<synchronous>, transform_indices = @transform_5, window_bounds = array<i64: 1, 128>}]} {
    %c0_i32 = arith.constant 0 : i32
    %0 = arith.cmpi eq, %arg0, %c0_i32 : i32
    %1 = arith.extui %0 : i1 to i32
    %c0_i32_0 = arith.constant 0 : i32
    %2 = arith.cmpi ne, %1, %c0_i32_0 : i32
    scf.if %2 {
      %c0_24 = arith.constant 0 : index
      %c0_25 = arith.constant 0 : index
      %32 = vector.load %arg1[%c0_24, %c0_25] : memref<32x128xbf16, #tpu.memory_space<vmem>>, vector<32x128xbf16>
      %c0_26 = arith.constant 0 : index
      %c0_27 = arith.constant 0 : index
      %33 = vector.load %arg7[%c0_26, %c0_27] : memref<32x128xbf16, #tpu.memory_space<vmem>>, vector<32x128xbf16>
      tpu.vector_store %arg7[%c0_26, %c0_27], %32 {strides = array<i32>} : memref<32x128xbf16, #tpu.memory_space<vmem>>, vector<32x128xbf16>,
    } else {
    }
    %c0 = arith.constant 0 : index
    %c0_1 = arith.constant 0 : index
    %3 = vector.load %arg7[%c0, %c0_1] : memref<32x128xbf16, #tpu.memory_space<vmem>>, vector<32x128xbf16>
    %c0_2 = arith.constant 0 : index
    %c0_3 = arith.constant 0 : index
    %c0_4 = arith.constant 0 : index
    %4 = vector.load %arg2[%c0_2, %c0_3, %c0_4] : memref<1x128x256xbf16, #tpu.memory_space<vmem>>, vector<1x128x256xbf16>
    %5 = vector.shape_cast %4 : vector<1x128x256xbf16> to vector<128x256xbf16>
    %c0_5 = arith.constant 0 : index
    %c0_6 = arith.constant 0 : index
    %c0_7 = arith.constant 0 : index
    %6 = vector.load %arg4[%c0_5, %c0_6, %c0_7] : memref<1x32x1xf32, #tpu.memory_space<vmem>>, vector<1x32x1xf32>
    %7 = vector.shape_cast %6 : vector<1x32x1xf32> to vector<32x1xf32>
    %c0_8 = arith.constant 0 : index
    %c0_9 = arith.constant 0 : index
    %c0_10 = arith.constant 0 : index
    %c0_11 = arith.constant 0 : index
    %8 = vector.load %arg3[%c0_8, %c0_9, %c0_10, %c0_11] : memref<1x3x32x32xbf16, #tpu.memory_space<vmem>>, vector<1x1x32x32xbf16>
    %9 = vector.shape_cast %8 : vector<1x1x32x32xbf16> to vector<32x32xbf16>
    %cst = arith.constant dense<0.000000e+00> : vector<32x128xf32>
    %10 = tpu.matmul %9, %3, %cst {dimension_numbers = #tpu.dot_dimension_numbers<[1], [0], [0], [1], [0, 0, 1, 1], [], []>} : vector<32x32xbf16>, vector<32x128xbf16>, vector<32x128xf32> -> vector<32x128xf32>
    %11 = vector.broadcast %7 : vector<32x1xf32> to vector<32x128xf32>
    %12 = arith.addf %10, %11 : vector<32x128xf32>
    %cst_12 = arith.constant dense<0.000000e+00> : vector<32x256xf32>
    %13 = tpu.matmul %3, %5, %cst_12 {dimension_numbers = #tpu.dot_dimension_numbers<[1], [0], [0], [1], [0, 0, 1, 1], [], []>} : vector<32x128xbf16>, vector<128x256xbf16>, vector<32x256xf32> -> vector<32x256xf32>
    %c0_13 = arith.constant 0 : index
    %c1 = arith.constant 1 : index
    %c0_14 = arith.constant 0 : index
    %c0_15 = arith.constant 0 : index
    %14 = vector.load %arg3[%c0_13, %c1, %c0_14, %c0_15] : memref<1x3x32x32xbf16, #tpu.memory_space<vmem>>, vector<1x1x32x32xbf16>
    %15 = vector.shape_cast %14 : vector<1x1x32x32xbf16> to vector<32x32xbf16>
    %16 = vector.extract_strided_slice %13 {offsets = [0, 0], sizes = [32, 128], strides = [1, 1]} : vector<32x256xf32> to vector<32x128xf32>
    %17 = arith.truncf %16 : vector<32x128xf32> to vector<32x128xbf16>
    %cst_16 = arith.constant dense<0.000000e+00> : vector<32x128xf32>
    %18 = tpu.matmul %15, %17, %cst_16 {dimension_numbers = #tpu.dot_dimension_numbers<[1], [0], [0], [1], [0, 0, 1, 1], [], []>} : vector<32x32xbf16>, vector<32x128xbf16>, vector<32x128xf32> -> vector<32x128xf32>
    %19 = arith.addf %12, %18 : vector<32x128xf32>
    %c0_17 = arith.constant 0 : index
    %c2 = arith.constant 2 : index
    %c0_18 = arith.constant 0 : index
    %c0_19 = arith.constant 0 : index
    %20 = vector.load %arg3[%c0_17, %c2, %c0_18, %c0_19] : memref<1x3x32x32xbf16, #tpu.memory_space<vmem>>, vector<1x1x32x32xbf16>
    %21 = vector.shape_cast %20 : vector<1x1x32x32xbf16> to vector<32x32xbf16>
    %22 = vector.extract_strided_slice %13 {offsets = [0, 128], sizes = [32, 128], strides = [1, 1]} : vector<32x256xf32> to vector<32x128xf32>
    %23 = arith.truncf %22 : vector<32x128xf32> to vector<32x128xbf16>
    %cst_20 = arith.constant dense<0.000000e+00> : vector<32x128xf32>
    %24 = tpu.matmul %21, %23, %cst_20 {dimension_numbers = #tpu.dot_dimension_numbers<[1], [0], [0], [1], [0, 0, 1, 1], [], []>} : vector<32x32xbf16>, vector<32x128xbf16>, vector<32x128xf32> -> vector<32x128xf32>
    %25 = arith.addf %19, %24 : vector<32x128xf32>
    %c2_i32 = arith.constant 2 : i32
    %26 = arith.cmpi slt, %arg0, %c2_i32 : i32
    %27 = arith.extui %26 : i1 to i32
    %c0_i32_21 = arith.constant 0 : i32
    %28 = arith.cmpi ne, %27, %c0_i32_21 : i32
    scf.if %28 {
      %32 = arith.truncf %25 : vector<32x128xf32> to vector<32x128xbf16>
      %c0_24 = arith.constant 0 : index
      %c0_25 = arith.constant 0 : index
      %33 = vector.load %arg7[%c0_24, %c0_25] : memref<32x128xbf16, #tpu.memory_space<vmem>>, vector<32x128xbf16>
      tpu.vector_store %arg7[%c0_24, %c0_25], %32 {strides = array<i32>} : memref<32x128xbf16, #tpu.memory_space<vmem>>, vector<32x128xbf16>,
    } else {
    }
    %c2_i32_22 = arith.constant 2 : i32
    %29 = arith.cmpi eq, %arg0, %c2_i32_22 : i32
    %30 = arith.extui %29 : i1 to i32
    %c0_i32_23 = arith.constant 0 : i32
    %31 = arith.cmpi ne, %30, %c0_i32_23 : i32
    scf.if %31 {
      %32 = vector.extract_strided_slice %25 {offsets = [0, 0], sizes = [1, 128], strides = [1, 1]} : vector<32x128xf32> to vector<1x128xf32>
      %c0_24 = arith.constant 0 : index
      %c0_25 = arith.constant 0 : index
      %33 = vector.load %arg5[%c0_24, %c0_25] : memref<1x128xf32, #tpu.memory_space<vmem>>, vector<1x128xf32>
      %cst_26 = arith.constant 0.000000e+00 : f32
      %34 = vector.broadcast %cst_26 : f32 to vector<1x128xf32>
      %35 = arith.cmpf ogt, %33, %34 : vector<1x128xf32>
      %cst_27 = arith.constant -1.000000e+30 : f32
      %36 = vector.broadcast %cst_27 : f32 to vector<1x128xf32>
      %37 = arith.select %35, %32, %36 : vector<1x128xi1>, vector<1x128xf32>
      %cst_28 = arith.constant dense<0xFF800000> : vector<1xf32>
      %38 = vector.multi_reduction <maximumf>, %37, %cst_28 [1] : vector<1x128xf32> to vector<1xf32>
      %39 = vector.shape_cast %38 : vector<1xf32> to vector<1x1xf32>
      %40 = vector.broadcast %39 : vector<1x1xf32> to vector<1x128xf32>
      %41 = arith.subf %37, %40 : vector<1x128xf32>
      %42 = math.exp %41 : vector<1x128xf32>
      %cst_29 = arith.constant dense<0.000000e+00> : vector<1xf32>
      %43 = vector.multi_reduction <add>, %42, %cst_29 [1] : vector<1x128xf32> to vector<1xf32>
      %44 = vector.shape_cast %43 : vector<1xf32> to vector<1x1xf32>
      %45 = vector.broadcast %44 : vector<1x1xf32> to vector<1x128xf32>
      %46 = arith.divf %42, %45 : vector<1x128xf32>
      %c0_30 = arith.constant 0 : index
      %c0_31 = arith.constant 0 : index
      %47 = vector.load %arg6[%c0_30, %c0_31] : memref<1x128xf32, #tpu.memory_space<vmem>>, vector<1x128xf32>
      tpu.vector_store %arg6[%c0_30, %c0_31], %46 {strides = array<i32>} : memref<1x128xf32, #tpu.memory_space<vmem>>, vector<1x128xf32>,
    } else {
    }
    return
  }
  func.func @transform_0(%arg0: i32) -> (i32, i32) {
    %c0_i32 = arith.constant 0 : i32
    %c0_i32_0 = arith.constant 0 : i32
    %c0_i32_1 = arith.constant 0 : i32
    return %c0_i32, %c0_i32_0 : i32, i32
  }
  func.func @transform_1(%arg0: i32) -> (i32, i32, i32) {
    %c0_i32 = arith.constant 0 : i32
    %c0_i32_0 = arith.constant 0 : i32
    %c0_i32_1 = arith.constant 0 : i32
    return %arg0, %c0_i32, %c0_i32_0 : i32, i32, i32
  }
  func.func @transform_2(%arg0: i32) -> (i32, i32, i32, i32) {
    %c0_i32 = arith.constant 0 : i32
    %c0_i32_0 = arith.constant 0 : i32
    %c0_i32_1 = arith.constant 0 : i32
    %c0_i32_2 = arith.constant 0 : i32
    return %arg0, %c0_i32, %c0_i32_0, %c0_i32_1 : i32, i32, i32, i32
  }
  func.func @transform_3(%arg0: i32) -> (i32, i32, i32) {
    %c0_i32 = arith.constant 0 : i32
    %c0_i32_0 = arith.constant 0 : i32
    %c0_i32_1 = arith.constant 0 : i32
    return %arg0, %c0_i32, %c0_i32_0 : i32, i32, i32
  }
  func.func @transform_4(%arg0: i32) -> (i32, i32) {
    %c0_i32 = arith.constant 0 : i32
    %c0_i32_0 = arith.constant 0 : i32
    %c0_i32_1 = arith.constant 0 : i32
    return %c0_i32, %c0_i32_0 : i32, i32
  }
  func.func @transform_5(%arg0: i32) -> (i32, i32) {
    %c0_i32 = arith.constant 0 : i32
    %c0_i32_0 = arith.constant 0 : i32
    %c0_i32_1 = arith.constant 0 : i32
    return %c0_i32, %c0_i32_0 : i32, i32
  }
}

</mosaic_0001>

<llo_original>
// kernel: tpu_custom_call.1
$region0: #{tpu_custom_call.1}
  #allocation0 [shape = 'u32[]', space=smem, size = 0x4, offset = 0x4, fixed_abs, tag = 'smem constant byte address 0x4 - core index']
  #allocation1 [shape = 'u32[144,128]{1,0:T(1,128)}', space=vmem, size = 0x12000, scoped, tag = 'internal scratch']
  #allocation2 [shape = 'bf16[32,128]{1,0:T(16,128)(2,1)}', space=vmem, size = 0x2000, scoped, tag = 'scratch operand']
  %s0 = inlined_call_operand.vmem [shape: bf16[32,128], index: 0, kind: input, shape index: {}]
  %s1 = inlined_call_operand.hbm [shape: bf16[3,128,256], index: 1, kind: input, shape index: {}]
  %s2 = inlined_call_operand.hbm [shape: bf16[3,3,32,32], index: 2, kind: input, shape index: {}]
  %s3 = inlined_call_operand.vmem [shape: f32[3,32,1], index: 3, kind: input, shape index: {}]
  %s4 = inlined_call_operand.vmem [shape: f32[1,128], index: 4, kind: input, shape index: {}]
  %s5 = inlined_call_operand.hbm [shape: f32[1,128], index: 5, kind: output, shape index: {}]
  %s6 = sld [smem:[#allocation0]]
  $region73: #{tpu_custom_call.1} parent=0
    _
  %s8 = ssub.s32 1, %s6
  %s9 = scalar_select 0, %s8, %s6
  $region1: #{tpu_custom_call.1} parent=0
    #allocation3 [shape = 'u8[131072]{0}', space=vmem, size = 0x20000, scoped, tag = 'input window, operand 1']
    #allocation4 [shape = 's32[2]{0}', space=sflag, size = 0x8, scoped, tag = 'scoped memory for tpu_custom_call.1']
    #allocation5 [shape = 's32[2]{0}', space=sflag, size = 0x8, scoped, tag = 'scoped memory for tpu_custom_call.1']
    #allocation6 [shape = 'u8[49152]{0}', space=vmem, size = 0xc000, scoped, tag = 'input window, operand 2']
    #allocation7 [shape = 's32[2]{0}', space=sflag, size = 0x8, scoped, tag = 'scoped memory for tpu_custom_call.1']
    #allocation8 [shape = 'u8[512]{0}', space=vmem, size = 0x400, scoped, tag = 'output window, operand 0, single buffered']
    %10 = vsyncpa [#allocation4], 0
    %s11 = scalar_lea.sflag [#allocation4], 1
    %12 = vsyncpa %s11, 0
    %13 = vsyncpa [#allocation7], 0
    %s14 = scalar_lea.sflag [#allocation7], 1
    %15 = vsyncpa %s14, 0
    %16 = vsyncpa [#allocation5], 0
    loop: start=0, step=1, limit=5
    $region2: #{tpu_custom_call.1} parent=1 // loop_pre_header
      _
    $region3: #{tpu_custom_call.1} parent=1 // loop_header
      %s18 = sphi 0, %s22
      %p19 = scmp.ge.s32.totalorder %s18, 5
      %s26 = sphi 0, %s26
      %s28 = sphi 0, %s26
      %s29 = sphi 0, %s28
      %s43 = sphi 0, %s29
      %s49 = sphi 0, %s51
      %s52 = sphi 0, %s49
      %s53 = sphi 0, %s52
      %s69 = sphi 0, %s53
      %s75 = sphi 0, %s77
      %s78 = sphi 0, %s75
      %s79 = sphi 0, %s78
      %s95 = sphi 0, %s79
      %s101 = sphi 0, %s103
      %s104 = sphi 0, %s101
      %s105 = sphi 0, %s104
      %s121 = sphi 0, %s105
      %s125 = sphi 0, %s125
      %s127 = sphi 0, %s125
      %s128 = sphi 0, %s127
      %s142 = sphi 0, %s128
      %s146 = sphi 0, %s146
      %s148 = sphi 0, %s146
      %s149 = sphi 0, %s148
      %s163 = sphi 0, %s149
    $region4: #{tpu_custom_call.1} parent=1 // loop_header_branch
      %21 = sbr.rel (%p19) target = $region8
    $region5: #{tpu_custom_call.1} parent=1 // loop_body
      %s23 = ssub.s32 %s18, 1
      %s24 = ssub.s32 %s18, 2
      %s25 = sadd.s32 %s18, 1
      %s27 = sadd.s32 %s26, 1
      %p30 = scmp.eq.s32.totalorder %s18, 2
      %p31 = scmp.ne.s32.totalorder %s26, %s28
      %p32 = scmp.eq.s32.totalorder %s18, 0
      %p33 = por %p31, %p32
      %p34 = scmp.ne.s32.totalorder %s26, %s28
      %p35 = scmp.eq.s32.totalorder %s23, 2
      %p36 = por %p34, %p35
      %p37 = scmp.ne.s32.totalorder %s28, %s29
      %p38 = scmp.eq.s32.totalorder %s23, 0
      %p39 = por %p37, %p38
      %p40 = scmp.ne.s32.totalorder %s28, %s29
      %p41 = scmp.eq.s32.totalorder %s24, 2
      %p42 = por %p40, %p41
      %p44 = scmp.ne.s32.totalorder %s29, %s43
      %p45 = scmp.eq.s32.totalorder %s24, 0
      %p46 = por %p44, %p45
      %s47 = ssub.s32 %s18, %s25
      %p48 = scmp.eq.s32.totalorder %s47, 0
      %s50 = sadd.s32 %s49, 1
      %s51 = scalar_select %p48, %s49, %s50
      %p54 = pneg %p48
      %p55 = scmp.eq.s32.totalorder %s18, 2
      %p56 = por %p54, %p55
      %p57 = scmp.ne.s32.totalorder %s49, %s52
      %p58 = scmp.eq.s32.totalorder %s18, 0
      %p59 = por %p57, %p58
      %p60 = scmp.ne.s32.totalorder %s49, %s52
      %p61 = scmp.eq.s32.totalorder %s23, 2
      %p62 = por %p60, %p61
      %p63 = scmp.ne.s32.totalorder %s52, %s53
      %p64 = scmp.eq.s32.totalorder %s23, 0
      %p65 = por %p63, %p64
      %p66 = scmp.ne.s32.totalorder %s52, %s53
      %p67 = scmp.eq.s32.totalorder %s24, 2
      %p68 = por %p66, %p67
      %p70 = scmp.ne.s32.totalorder %s53, %s69
      %p71 = scmp.eq.s32.totalorder %s24, 0
      %p72 = por %p70, %p71
      %s73 = ssub.s32 %s18, %s25
      %p74 = scmp.eq.s32.totalorder %s73, 0
      %s76 = sadd.s32 %s75, 1
      %s77 = scalar_select %p74, %s75, %s76
      %p80 = pneg %p74
      %p81 = scmp.eq.s32.totalorder %s18, 2
      %p82 = por %p80, %p81
      %p83 = scmp.ne.s32.totalorder %s75, %s78
      %p84 = scmp.eq.s32.totalorder %s18, 0
      %p85 = por %p83, %p84
      %p86 = scmp.ne.s32.totalorder %s75, %s78
      %p87 = scmp.eq.s32.totalorder %s23, 2
      %p88 = por %p86, %p87
      %p89 = scmp.ne.s32.totalorder %s78, %s79
      %p90 = scmp.eq.s32.totalorder %s23, 0
      %p91 = por %p89, %p90
      %p92 = scmp.ne.s32.totalorder %s78, %s79
      %p93 = scmp.eq.s32.totalorder %s24, 2
      %p94 = por %p92, %p93
      %p96 = scmp.ne.s32.totalorder %s79, %s95
      %p97 = scmp.eq.s32.totalorder %s24, 0
      %p98 = por %p96, %p97
      %s99 = ssub.s32 %s18, %s25
      %p100 = scmp.eq.s32.totalorder %s99, 0
      %s102 = sadd.s32 %s101, 1
      %s103 = scalar_select %p100, %s101, %s102
      %p106 = pneg %p100
      %p107 = scmp.eq.s32.totalorder %s18, 2
      %p108 = por %p106, %p107
      %p109 = scmp.ne.s32.totalorder %s101, %s104
      %p110 = scmp.eq.s32.totalorder %s18, 0
      %p111 = por %p109, %p110
      %p112 = scmp.ne.s32.totalorder %s101, %s104
      %p113 = scmp.eq.s32.totalorder %s23, 2
      %p114 = por %p112, %p113
      %p115 = scmp.ne.s32.totalorder %s104, %s105
      %p116 = scmp.eq.s32.totalorder %s23, 0
      %p117 = por %p115, %p116
      %p118 = scmp.ne.s32.totalorder %s104, %s105
      %p119 = scmp.eq.s32.totalorder %s24, 2
      %p120 = por %p118, %p119
      %p122 = scmp.ne.s32.totalorder %s105, %s121
      %p123 = scmp.eq.s32.totalorder %s24, 0
      %p124 = por %p122, %p123
      %s126 = sadd.s32 %s125, 1
      %p129 = scmp.eq.s32.totalorder %s18, 2
      %p130 = scmp.ne.s32.totalorder %s125, %s127
      %p131 = scmp.eq.s32.totalorder %s18, 0
      %p132 = por %p130, %p131
      %p133 = scmp.ne.s32.totalorder %s125, %s127
      %p134 = scmp.eq.s32.totalorder %s23, 2
      %p135 = por %p133, %p134
      %p136 = scmp.ne.s32.totalorder %s127, %s128
      %p137 = scmp.eq.s32.totalorder %s23, 0
      %p138 = por %p136, %p137
      %p139 = scmp.ne.s32.totalorder %s127, %s128
      %p140 = scmp.eq.s32.totalorder %s24, 2
      %p141 = por %p139, %p140
      %p143 = scmp.ne.s32.totalorder %s128, %s142
      %p144 = scmp.eq.s32.totalorder %s24, 0
      %p145 = por %p143, %p144
      %s147 = sadd.s32 %s146, 1
      %p150 = scmp.eq.s32.totalorder %s18, 2
      %p151 = scmp.ne.s32.totalorder %s146, %s148
      %p152 = scmp.eq.s32.totalorder %s18, 0
      %p153 = por %p151, %p152
      %p154 = scmp.ne.s32.totalorder %s146, %s148
      %p155 = scmp.eq.s32.totalorder %s23, 2
      %p156 = por %p154, %p155
      %p157 = scmp.ne.s32.totalorder %s148, %s149
      %p158 = scmp.eq.s32.totalorder %s23, 0
      %p159 = por %p157, %p158
      %p160 = scmp.ne.s32.totalorder %s148, %s149
      %p161 = scmp.eq.s32.totalorder %s24, 2
      %p162 = por %p160, %p161
      %p164 = scmp.ne.s32.totalorder %s149, %s163
      %p165 = scmp.eq.s32.totalorder %s24, 0
      %p166 = por %p164, %p165
      %p167 = scmp.le.s32.totalorder 1, %s18
      %p168 = scmp.lt.s32.totalorder %s18, 4
      %p169 = pnand %p167, %p168
      %p170 = pneg %p169
      // Predicated region
      $region9: #{tpu_custom_call.1} parent=5 // pred_check
        _
      $region10: #{tpu_custom_call.1} parent=5 // pred_check_branch
        %172 = sbr.rel (%p169) target = $region12
      $region11: #{tpu_custom_call.1} parent=5 // pred_region
        %s173 = ssub.s32 %s18, 1
        // Predicated region
        $region13: #{tpu_custom_call.1} parent=11 // pred_check
          %p174 = pneg %p39
        $region14: #{tpu_custom_call.1} parent=11 // pred_check_branch
          %176 = sbr.rel (%p174) target = $region16
        $region15: #{tpu_custom_call.1} parent=11 // pred_region
          _
        $region16: #{tpu_custom_call.1} parent=11 // pred_fallthru
          _
        // Predicated region
        $region17: #{tpu_custom_call.1} parent=11 // pred_check
          %p177 = pneg %p138
        $region18: #{tpu_custom_call.1} parent=11 // pred_check_branch
          %179 = sbr.rel (%p177) target = $region20
        $region19: #{tpu_custom_call.1} parent=11 // pred_region
          _
        $region20: #{tpu_custom_call.1} parent=11 // pred_fallthru
          _
      $region12: #{tpu_custom_call.1} parent=5 // pred_fallthru
        _
      %p180 = scmp.lt.s32.totalorder %s18, 3
      // Predicated region
      $region21: #{tpu_custom_call.1} parent=5 // pred_check
        %p181 = pneg %p180
      $region22: #{tpu_custom_call.1} parent=5 // pred_check_branch
        %183 = sbr.rel (%p181) target = $region24
      $region23: #{tpu_custom_call.1} parent=5 // pred_region
        // Predicated region
        $region25: #{tpu_custom_call.1} parent=23 // pred_check
          %p184 = pneg %p59
        $region26: #{tpu_custom_call.1} parent=23 // pred_check_branch
          %186 = sbr.rel (%p184) target = $region28
        $region27: #{tpu_custom_call.1} parent=23 // pred_region
          %s187 = sand.u32 %s49, 1
          %s188 = scalar_lea.sflag [#allocation4], %s187
          %s189 = sand.u32 %s49, 1
          %s190 = smul.addr %s189, 128
          %s191 = scalar_lea.vmem [#allocation3], %s190
          %s193 = ssub.s32 2048, 2048
          %194 = vsyncadd %s188, %s193
          %s195 = smul.addr %s18, 32
          %s196 = smul.addr %s195, 64
          %s197 = scalar_lea.hbm %s1, %s196
          %s198 = sshll.u32 %s191, 4
          %s199 = int_to_ptr.vmem [resolvable:$true] %s198
          %204 = dma.hbm_to_vmem [thread:$0]  %s197, 2048, %s199, %s188, 128, 128, 8
        $region28: #{tpu_custom_call.1} parent=23 // pred_fallthru
          _
        // Predicated region
        $region29: #{tpu_custom_call.1} parent=23 // pred_check
          %p205 = pneg %p85
        $region30: #{tpu_custom_call.1} parent=23 // pred_check_branch
          %207 = sbr.rel (%p205) target = $region32
        $region31: #{tpu_custom_call.1} parent=23 // pred_region
          %s208 = sand.u32 %s75, 1
          %s209 = scalar_lea.sflag [#allocation7], %s208
          %s210 = sand.u32 %s75, 1
          %s211 = smul.addr %s210, 48
          %s212 = scalar_lea.vmem [#allocation6], %s211
          %s214 = ssub.s32 768, 768
          %215 = vsyncadd %s209, %s214
          %s216 = smul.addr %s18, 12
          %s217 = smul.addr %s216, 64
          %s218 = scalar_lea.hbm %s2, %s217
          %s219 = sshll.u32 %s212, 4
          %s220 = int_to_ptr.vmem [resolvable:$true] %s219
          %225 = dma.hbm_to_vmem [thread:$0]  %s218, 768, %s220, %s209, 64, 64, 4
        $region32: #{tpu_custom_call.1} parent=23 // pred_fallthru
          _
        // Predicated region
        $region33: #{tpu_custom_call.1} parent=23 // pred_check
          %p226 = pneg %p111
        $region34: #{tpu_custom_call.1} parent=23 // pred_check_branch
          %228 = sbr.rel (%p226) target = $region36
        $region35: #{tpu_custom_call.1} parent=23 // pred_region
          %p229 = scmp.lt.s32.totalorder %s18, 2
          %s230 = scalar_select %p229, %s18, 2
          %s231 = smul.addr %s230, 4
          %s232 = smul.addr %s231, 8
          %s233 = scalar_lea.vmem %s3, %s232
        $region36: #{tpu_custom_call.1} parent=23 // pred_fallthru
          _
      $region24: #{tpu_custom_call.1} parent=5 // pred_fallthru
        _
      %p234 = scmp.le.s32.totalorder 1, %s18
      %p235 = scmp.lt.s32.totalorder %s18, 4
      %p236 = pnand %p234, %p235
      %p237 = pneg %p236
      // Predicated region
      $region37: #{tpu_custom_call.1} parent=5 // pred_check
        _
      $region38: #{tpu_custom_call.1} parent=5 // pred_check_branch
        %239 = sbr.rel (%p236) target = $region40
      $region39: #{tpu_custom_call.1} parent=5 // pred_region
        %s240 = ssub.s32 %s18, 1
        %s241 = sand.u32 %s52, 1
        %s242 = scalar_lea.sflag [#allocation4], %s241
        %s243 = sand.u32 %s52, 1
        %s244 = smul.addr %s243, 128
        %s245 = scalar_lea.vmem [#allocation3], %s244
        // Predicated region
        $region41: #{tpu_custom_call.1} parent=39 // pred_check
          %p246 = pneg %p65
        $region42: #{tpu_custom_call.1} parent=39 // pred_check_branch
          %248 = sbr.rel (%p246) target = $region44
        $region43: #{tpu_custom_call.1} parent=39 // pred_region
          %249 = dma.done %s242, 2048
        $region44: #{tpu_custom_call.1} parent=39 // pred_fallthru
          _
        %s250 = sand.u32 %s78, 1
        %s251 = scalar_lea.sflag [#allocation7], %s250
        %s252 = sand.u32 %s78, 1
        %s253 = smul.addr %s252, 48
        %s254 = scalar_lea.vmem [#allocation6], %s253
        // Predicated region
        $region45: #{tpu_custom_call.1} parent=39 // pred_check
          %p255 = pneg %p91
        $region46: #{tpu_custom_call.1} parent=39 // pred_check_branch
          %257 = sbr.rel (%p255) target = $region48
        $region47: #{tpu_custom_call.1} parent=39 // pred_region
          %258 = dma.done %s251, 768
        $region48: #{tpu_custom_call.1} parent=39 // pred_fallthru
          _
        %p259 = pneg %p39
        %p260 = pneg %p36
        %s261 = sand.u32 %s52, 1
        %s262 = scalar_lea.sflag [#allocation4], %s261
        %s263 = sand.u32 %s52, 1
        %s264 = smul.addr %s263, 128
        %s265 = scalar_lea.vmem [#allocation3], %s264
        %p266 = pneg %p65
        %p267 = pneg %p62
        %s268 = sand.u32 %s78, 1
        %s269 = scalar_lea.sflag [#allocation7], %s268
        %s270 = sand.u32 %s78, 1
        %s271 = smul.addr %s270, 48
        %s272 = scalar_lea.vmem [#allocation6], %s271
        %p273 = pneg %p91
        %p274 = pneg %p88
        %p275 = scmp.lt.s32.totalorder %s23, 2
        %s276 = scalar_select %p275, %s23, 2
        %s277 = smul.addr %s276, 4
        %s278 = smul.addr %s277, 8
        %s279 = scalar_lea.vmem %s3, %s278
        %p280 = pneg %p117
        %p281 = pneg %p114
        %p282 = pneg %p138
        %p283 = pneg %p135
        %p284 = pneg %p159
        %p285 = pneg %p156
        %p286 = scmp.lt.s32.totalorder %s23, 2
        %s287 = scalar_select %p286, %s23, 2
        %s288 = smul.addr %s287, 4
        %s289 = smul.addr %s288, 8
        %s290 = scalar_lea.vmem %s3, %s289
        %p292 = scmp.eq.s32.totalorder %s23, 0
        // Predicated region
        $region49: #{tpu_custom_call.1} parent=39 // pred_check
          %p293 = pneg %p292
        $region50: #{tpu_custom_call.1} parent=39 // pred_check_branch
          %295 = sbr.rel (%p293) target = $region52
        $region51: #{tpu_custom_call.1} parent=39 // pred_region
          %v296 = vld [vmem:[%s0] sm:$0xf]
          %v297 = vld [vmem:[%s0 + $0x4] sm:$0xf]
          %v298 = vld [vmem:[%s0 + $0x8] sm:$0xf]
          %v299 = vld [vmem:[%s0 + $0xc] sm:$0xf]
          %v304 = vunpack.c.l.b16 %v296
          %v305 = vunpack.c.l.b16 %v297
          %v306 = vunpack.c.l.b16 %v298
          %v307 = vunpack.c.l.b16 %v299
          %v308 = vpack.c.b16 %v305, %v304
          %v309 = vpack.c.b16 %v307, %v306
          %312 = vst [vmem:[#allocation2] sm:$0xff] %v308
          %313 = vst [vmem:[#allocation2 + $0x8] sm:$0xff] %v309
        $region52: #{tpu_custom_call.1} parent=39 // pred_fallthru
          _
        %v314 = vld [vmem:[#allocation2] sm:$0xff]
        %v315 = vld [vmem:[#allocation2 + $0x8] sm:$0xff]
        %v316 = vld [vmem:[%s245] sm:$0xff]
        %v317 = vld [vmem:[%s245 + $0x8] sm:$0xff]
        %v318 = vld [vmem:[%s245 + $0x10] sm:$0xff]
        %v319 = vld [vmem:[%s245 + $0x18] sm:$0xff]
        %v320 = vld [vmem:[%s245 + $0x20] sm:$0xff]
        %v321 = vld [vmem:[%s245 + $0x28] sm:$0xff]
        %v322 = vld [vmem:[%s245 + $0x30] sm:$0xff]
        %v323 = vld [vmem:[%s245 + $0x38] sm:$0xff]
        %v324 = vld [vmem:[%s245 + $0x40] sm:$0xff]
        %v325 = vld [vmem:[%s245 + $0x48] sm:$0xff]
        %v326 = vld [vmem:[%s245 + $0x50] sm:$0xff]
        %v327 = vld [vmem:[%s245 + $0x58] sm:$0xff]
        %v328 = vld [vmem:[%s245 + $0x60] sm:$0xff]
        %v329 = vld [vmem:[%s245 + $0x68] sm:$0xff]
        %v330 = vld [vmem:[%s245 + $0x70] sm:$0xff]
        %v331 = vld [vmem:[%s245 + $0x78] sm:$0xff]
        %v332 = vld [vmem:[%s290] sm:$0xff]
        %v333 = vld [vmem:[%s290 + $0x8] sm:$0xff]
        %v334 = vld [vmem:[%s290 + $0x10] sm:$0xff]
        %v335 = vld [vmem:[%s290 + $0x18] sm:$0xff]
        %v336 = vld [vmem:[%s254] sm:$0xf]
        %v337 = vld [vmem:[%s254 + $0x4] sm:$0xf]
        %v338 = vld [vmem:[%s254 + $0x8] sm:$0xf]
        %v339 = vld [vmem:[%s254 + $0xc] sm:$0xf]
        %341 = vset.pattern.permute.xlu0 0
        %342 = vperm.xlu0 %341, %v332
        %v343 = vpop.permute.xlu0 %342
        %346 = vset.pattern.permute.xlu0 0
        %347 = vperm.xlu0 %346, %v333
        %v348 = vpop.permute.xlu0 %347
        %351 = vset.pattern.permute.xlu0 0
        %352 = vperm.xlu0 %351, %v334
        %v353 = vpop.permute.xlu0 %352
        %356 = vset.pattern.permute.xlu0 0
        %357 = vperm.xlu0 %356, %v335
        %v358 = vpop.permute.xlu0 %357
        %v364 = vunpack.c.l.b16 %v336
        %v365 = vunpack.c.l.b16 %v337
        %v366 = vunpack.c.l.b16 %v338
        %v367 = vunpack.c.l.b16 %v339
        %v368 = vpack.c.b16 %v365, %v364
        %v369 = vpack.c.b16 %v367, %v366
        %vm370 = vcmask 261120
        %v372 = vsel %vm370, %v368, 0
        %v375 = vsel %vm370, %v369, 0
        %377 = vmatprep.subr.bf16.mxu0 0
        %378 = vmatpush1.bf16.msra.mxu0 %v314
        %379 = vmatprep.subr.bf16.mxu0 0
        %380 = vmatpush1.bf16.msra.mxu0 %v315
        %381 = vmatprep.subr.bf16.mxu0 0
        %382 = vmatpush1.bf16.msra.mxu0 0
        %383 = vmatprep.subr.bf16.mxu0 0
        %384 = vmatpush1.bf16.msra.mxu0 0
        %385 = vmatprep.subr.bf16.mxu0 0
        %386 = vmatpush1.bf16.msra.mxu0 0
        %387 = vmatprep.subr.bf16.mxu0 0
        %388 = vmatpush1.bf16.msra.mxu0 0
        %389 = vmatprep.subr.bf16.mxu0 0
        %390 = vmatpush1.bf16.msra.mxu0 0
        %391 = vmatprep.subr.bf16.mxu0 0
        %392 = vmatpush1.bf16.msra.mxu0 0
        %393 = vmatprep.subr.bf16.mxu0 0
        %394 = vmatpush1.bf16.msra.mxu0 0
        %395 = vmatprep.subr.bf16.mxu0 0
        %396 = vmatpush1.bf16.msra.mxu0 0
        %397 = vmatprep.subr.bf16.mxu0 0
        %398 = vmatpush1.bf16.msra.mxu0 0
        %399 = vmatprep.subr.bf16.mxu0 0
        %400 = vmatpush1.bf16.msra.mxu0 0
        %401 = vmatprep.subr.bf16.mxu0 0
        %402 = vmatpush1.bf16.msra.mxu0 0
        %403 = vmatprep.subr.bf16.mxu0 0
        %404 = vmatpush1.bf16.msra.mxu0 0
        %405 = vmatprep.subr.bf16.mxu0 0
        %406 = vmatpush1.bf16.msra.mxu0 0
        %407 = vmatprep.subr.bf16.mxu0 0
        %408 = vmatpush1.bf16.msra.mxu0 0
        %409 = vmatprep.mubr.bf16.mxu0 0
        %410 = vmatmul.mubr.bf16.gmra.mrb[0].mxu0 %v372
        %v411 = vpop.f32.mrb[0].mxu0
        %v412 = vadd.f32 %v343, %v411
        %v413 = vpop.f32.mrb[0].mxu0
        %v414 = vpop.f32.mrb[0].mxu0
        %v415 = vadd.f32 %v348, %v414
        %v416 = vpop.f32.mrb[0].mxu0
        %417 = vmatprep.mubr.bf16.mxu0 0
        %418 = vmatmul.mubr.bf16.gmra.mrb[0].mxu0 %v375
        %v419 = vpop.f32.mrb[0].mxu0
        %v420 = vadd.f32 %v353, %v419
        %v421 = vpop.f32.mrb[0].mxu0
        %v422 = vpop.f32.mrb[0].mxu0
        %v423 = vadd.f32 %v358, %v422
        %v424 = vpop.f32.mrb[0].mxu0
        %425 = vdwg.mxu0
        %v442 = vunpack.c.l.b16 %v316
        %v443 = vunpack.c.h.b16 %v316
        %v444 = vunpack.c.l.b16 %v317
        %v445 = vunpack.c.h.b16 %v317
        %v446 = vunpack.c.l.b16 %v318
        %v447 = vunpack.c.h.b16 %v318
        %v448 = vunpack.c.l.b16 %v319
        %v449 = vunpack.c.h.b16 %v319
        %v450 = vunpack.c.l.b16 %v320
        %v451 = vunpack.c.h.b16 %v320
        %v452 = vunpack.c.l.b16 %v321
        %v453 = vunpack.c.h.b16 %v321
        %v454 = vunpack.c.l.b16 %v322
        %v455 = vunpack.c.h.b16 %v322
        %v456 = vunpack.c.l.b16 %v323
        %v457 = vunpack.c.h.b16 %v323
        %v458 = vunpack.c.l.b16 %v324
        %v459 = vunpack.c.h.b16 %v324
        %v460 = vunpack.c.l.b16 %v325
        %v461 = vunpack.c.h.b16 %v325
        %v462 = vunpack.c.l.b16 %v326
        %v463 = vunpack.c.h.b16 %v326
        %v464 = vunpack.c.l.b16 %v327
        %v465 = vunpack.c.h.b16 %v327
        %v466 = vunpack.c.l.b16 %v328
        %v467 = vunpack.c.h.b16 %v328
        %v468 = vunpack.c.l.b16 %v329
        %v469 = vunpack.c.h.b16 %v329
        %v470 = vunpack.c.l.b16 %v330
        %v471 = vunpack.c.h.b16 %v330
        %v472 = vunpack.c.l.b16 %v331
        %v473 = vunpack.c.h.b16 %v331
        %v474 = vpack.c.b16 %v444, %v442
        %v475 = vpack.c.b16 %v445, %v443
        %v476 = vpack.c.b16 %v448, %v446
        %v477 = vpack.c.b16 %v449, %v447
        %v478 = vpack.c.b16 %v452, %v450
        %v479 = vpack.c.b16 %v453, %v451
        %v480 = vpack.c.b16 %v456, %v454
        %v481 = vpack.c.b16 %v457, %v455
        %v482 = vpack.c.b16 %v460, %v458
        %v483 = vpack.c.b16 %v461, %v459
        %v484 = vpack.c.b16 %v464, %v462
        %v485 = vpack.c.b16 %v465, %v463
        %v486 = vpack.c.b16 %v468, %v466
        %v487 = vpack.c.b16 %v469, %v467
        %v488 = vpack.c.b16 %v472, %v470
        %v489 = vpack.c.b16 %v473, %v471
        %506 = vmatprep.subr.bf16.mxu0 %v475
        %507 = vmatpush1.bf16.msra.mxu0 %v474
        %508 = vmatprep.subr.bf16.mxu0 %v477
        %509 = vmatpush1.bf16.msra.mxu0 %v476
        %510 = vmatprep.subr.bf16.mxu0 %v479
        %511 = vmatpush1.bf16.msra.mxu0 %v478
        %512 = vmatprep.subr.bf16.mxu0 %v481
        %513 = vmatpush1.bf16.msra.mxu0 %v480
        %514 = vmatprep.subr.bf16.mxu0 %v483
        %515 = vmatpush1.bf16.msra.mxu0 %v482
        %516 = vmatprep.subr.bf16.mxu0 %v485
        %517 = vmatpush1.bf16.msra.mxu0 %v484
        %518 = vmatprep.subr.bf16.mxu0 %v487
        %519 = vmatpush1.bf16.msra.mxu0 %v486
        %520 = vmatprep.subr.bf16.mxu0 %v489
        %521 = vmatpush1.bf16.msra.mxu0 %v488
        %522 = vmatprep.subr.bf16.mxu0 0
        %523 = vmatpush1.bf16.msra.mxu0 0
        %524 = vmatprep.subr.bf16.mxu0 0
        %525 = vmatpush1.bf16.msra.mxu0 0
        %526 = vmatprep.subr.bf16.mxu0 0
        %527 = vmatpush1.bf16.msra.mxu0 0
        %528 = vmatprep.subr.bf16.mxu0 0
        %529 = vmatpush1.bf16.msra.mxu0 0
        %530 = vmatprep.subr.bf16.mxu0 0
        %531 = vmatpush1.bf16.msra.mxu0 0
        %532 = vmatprep.subr.bf16.mxu0 0
        %533 = vmatpush1.bf16.msra.mxu0 0
        %534 = vmatprep.subr.bf16.mxu0 0
        %535 = vmatpush1.bf16.msra.mxu0 0
        %536 = vmatprep.subr.bf16.mxu0 0
        %537 = vmatpush1.bf16.msra.mxu0 0
        %538 = vmatprep.mubr.bf16.mxu0 0
        %539 = vmatmul.mubr.bf16.gmra.mrb[0].mxu0 %v314
        %v540 = vpop.f32.mrb[0].mxu0
        %v541 = vadd.f32 0.0, %v540
        %v542 = vpop.f32.mrb[0].mxu0
        %v543 = vadd.f32 0.0, %v542
        %v544 = vpop.f32.mrb[0].mxu0
        %v545 = vadd.f32 0.0, %v544
        %v546 = vpop.f32.mrb[0].mxu0
        %v547 = vadd.f32 0.0, %v546
        %548 = vmatprep.mubr.bf16.mxu0 0
        %549 = vmatmul.mubr.bf16.gmra.mrb[0].mxu0 %v315
        %v550 = vpop.f32.mrb[0].mxu0
        %v551 = vadd.f32 0.0, %v550
        %v552 = vpop.f32.mrb[0].mxu0
        %v553 = vadd.f32 0.0, %v552
        %v554 = vpop.f32.mrb[0].mxu0
        %v555 = vadd.f32 0.0, %v554
        %v556 = vpop.f32.mrb[0].mxu0
        %v557 = vadd.f32 0.0, %v556
        %558 = vdwg.mxu0
        %s559 = scalar_lea.vmem %s254, 16 [#allocation6]
        %v560 = vld [vmem:[%s559] sm:$0xf]
        %v561 = vld [vmem:[%s559 + $0x4] sm:$0xf]
        %v562 = vld [vmem:[%s559 + $0x8] sm:$0xf]
        %v563 = vld [vmem:[%s559 + $0xc] sm:$0xf]
        %v564 = vpack.c.bf16 %v545, %v541
        %v565 = vpack.c.bf16 %v555, %v551
        %v570 = vunpack.c.l.b16 %v560
        %v571 = vunpack.c.l.b16 %v561
        %v572 = vunpack.c.l.b16 %v562
        %v573 = vunpack.c.l.b16 %v563
        %v574 = vpack.c.b16 %v571, %v570
        %v575 = vpack.c.b16 %v573, %v572
        %v577 = vsel %vm370, %v574, 0
        %v580 = vsel %vm370, %v575, 0
        %582 = vmatprep.subr.bf16.mxu0 0
        %583 = vmatpush1.bf16.msra.mxu0 %v564
        %584 = vmatprep.subr.bf16.mxu0 0
        %585 = vmatpush1.bf16.msra.mxu0 %v565
        %586 = vmatprep.subr.bf16.mxu0 0
        %587 = vmatpush1.bf16.msra.mxu0 0
        %588 = vmatprep.subr.bf16.mxu0 0
        %589 = vmatpush1.bf16.msra.mxu0 0
        %590 = vmatprep.subr.bf16.mxu0 0
        %591 = vmatpush1.bf16.msra.mxu0 0
        %592 = vmatprep.subr.bf16.mxu0 0
        %593 = vmatpush1.bf16.msra.mxu0 0
        %594 = vmatprep.subr.bf16.mxu0 0
        %595 = vmatpush1.bf16.msra.mxu0 0
        %596 = vmatprep.subr.bf16.mxu0 0
        %597 = vmatpush1.bf16.msra.mxu0 0
        %598 = vmatprep.subr.bf16.mxu0 0
        %599 = vmatpush1.bf16.msra.mxu0 0
        %600 = vmatprep.subr.bf16.mxu0 0
        %601 = vmatpush1.bf16.msra.mxu0 0
        %602 = vmatprep.subr.bf16.mxu0 0
        %603 = vmatpush1.bf16.msra.mxu0 0
        %604 = vmatprep.subr.bf16.mxu0 0
        %605 = vmatpush1.bf16.msra.mxu0 0
        %606 = vmatprep.subr.bf16.mxu0 0
        %607 = vmatpush1.bf16.msra.mxu0 0
        %608 = vmatprep.subr.bf16.mxu0 0
        %609 = vmatpush1.bf16.msra.mxu0 0
        %610 = vmatprep.subr.bf16.mxu0 0
        %611 = vmatpush1.bf16.msra.mxu0 0
        %612 = vmatprep.subr.bf16.mxu0 0
        %613 = vmatpush1.bf16.msra.mxu0 0
        %614 = vmatprep.mubr.bf16.mxu0 0
        %615 = vmatmul.mubr.bf16.gmra.mrb[0].mxu0 %v577
        %v616 = vpop.f32.mrb[0].mxu0
        %v617 = vadd.f32 0.0, %v616
        %v618 = vpop.f32.mrb[0].mxu0
        %v619 = vpop.f32.mrb[0].mxu0
        %v620 = vadd.f32 0.0, %v619
        %v621 = vpop.f32.mrb[0].mxu0
        %622 = vmatprep.mubr.bf16.mxu0 0
        %623 = vmatmul.mubr.bf16.gmra.mrb[0].mxu0 %v580
        %v624 = vpop.f32.mrb[0].mxu0
        %v625 = vadd.f32 0.0, %v624
        %v626 = vpop.f32.mrb[0].mxu0
        %v627 = vpop.f32.mrb[0].mxu0
        %v628 = vadd.f32 0.0, %v627
        %v629 = vpop.f32.mrb[0].mxu0
        %630 = vdwg.mxu0
        %v631 = vadd.f32 %v412, %v617
        %v632 = vadd.f32 %v415, %v620
        %v633 = vadd.f32 %v420, %v625
        %v634 = vadd.f32 %v423, %v628
        %s635 = scalar_lea.vmem %s254, 32 [#allocation6]
        %v636 = vld [vmem:[%s635] sm:$0xf]
        %v637 = vld [vmem:[%s635 + $0x4] sm:$0xf]
        %v638 = vld [vmem:[%s635 + $0x8] sm:$0xf]
        %v639 = vld [vmem:[%s635 + $0xc] sm:$0xf]
        %v640 = vpack.c.bf16 %v547, %v543
        %v641 = vpack.c.bf16 %v557, %v553
        %v646 = vunpack.c.l.b16 %v636
        %v647 = vunpack.c.l.b16 %v637
        %v648 = vunpack.c.l.b16 %v638
        %v649 = vunpack.c.l.b16 %v639
        %v650 = vpack.c.b16 %v647, %v646
        %v651 = vpack.c.b16 %v649, %v648
        %v653 = vsel %vm370, %v650, 0
        %v656 = vsel %vm370, %v651, 0
        %658 = vmatprep.subr.bf16.mxu0 0
        %659 = vmatpush1.bf16.msra.mxu0 %v640
        %660 = vmatprep.subr.bf16.mxu0 0
        %661 = vmatpush1.bf16.msra.mxu0 %v641
        %662 = vmatprep.subr.bf16.mxu0 0
        %663 = vmatpush1.bf16.msra.mxu0 0
        %664 = vmatprep.subr.bf16.mxu0 0
        %665 = vmatpush1.bf16.msra.mxu0 0
        %666 = vmatprep.subr.bf16.mxu0 0
        %667 = vmatpush1.bf16.msra.mxu0 0
        %668 = vmatprep.subr.bf16.mxu0 0
        %669 = vmatpush1.bf16.msra.mxu0 0
        %670 = vmatprep.subr.bf16.mxu0 0
        %671 = vmatpush1.bf16.msra.mxu0 0
        %672 = vmatprep.subr.bf16.mxu0 0
        %673 = vmatpush1.bf16.msra.mxu0 0
        %674 = vmatprep.subr.bf16.mxu0 0
        %675 = vmatpush1.bf16.msra.mxu0 0
        %676 = vmatprep.subr.bf16.mxu0 0
        %677 = vmatpush1.bf16.msra.mxu0 0
        %678 = vmatprep.subr.bf16.mxu0 0
        %679 = vmatpush1.bf16.msra.mxu0 0
        %680 = vmatprep.subr.bf16.mxu0 0
        %681 = vmatpush1.bf16.msra.mxu0 0
        %682 = vmatprep.subr.bf16.mxu0 0
        %683 = vmatpush1.bf16.msra.mxu0 0
        %684 = vmatprep.subr.bf16.mxu0 0
        %685 = vmatpush1.bf16.msra.mxu0 0
        %686 = vmatprep.subr.bf16.mxu0 0
        %687 = vmatpush1.bf16.msra.mxu0 0
        %688 = vmatprep.subr.bf16.mxu0 0
        %689 = vmatpush1.bf16.msra.mxu0 0
        %690 = vmatprep.mubr.bf16.mxu0 0
        %691 = vmatmul.mubr.bf16.gmra.mrb[0].mxu0 %v653
        %v692 = vpop.f32.mrb[0].mxu0
        %v693 = vadd.f32 0.0, %v692
        %v694 = vpop.f32.mrb[0].mxu0
        %v695 = vpop.f32.mrb[0].mxu0
        %v696 = vadd.f32 0.0, %v695
        %v697 = vpop.f32.mrb[0].mxu0
        %698 = vmatprep.mubr.bf16.mxu0 0
        %699 = vmatmul.mubr.bf16.gmra.mrb[0].mxu0 %v656
        %v700 = vpop.f32.mrb[0].mxu0
        %v701 = vadd.f32 0.0, %v700
        %v702 = vpop.f32.mrb[0].mxu0
        %v703 = vpop.f32.mrb[0].mxu0
        %v704 = vadd.f32 0.0, %v703
        %v705 = vpop.f32.mrb[0].mxu0
        %706 = vdwg.mxu0
        %v707 = vadd.f32 %v631, %v693
        %v708 = vadd.f32 %v632, %v696
        %v709 = vadd.f32 %v633, %v701
        %v710 = vadd.f32 %v634, %v704
        %p711 = scmp.lt.s32.totalorder %s23, 2
        // Predicated region
        $region53: #{tpu_custom_call.1} parent=39 // pred_check
          %p712 = pneg %p711
        $region54: #{tpu_custom_call.1} parent=39 // pred_check_branch
          %714 = sbr.rel (%p712) target = $region56
        $region55: #{tpu_custom_call.1} parent=39 // pred_region
          %v715 = vpack.c.bf16 %v708, %v707
          %v716 = vpack.c.bf16 %v710, %v709
          %717 = vst [vmem:[#allocation2] sm:$0xff] %v715
          %718 = vst [vmem:[#allocation2 + $0x8] sm:$0xff] %v716
        $region56: #{tpu_custom_call.1} parent=39 // pred_fallthru
          _
        %p719 = scmp.eq.s32.totalorder %s23, 2
        // Predicated region
        $region57: #{tpu_custom_call.1} parent=39 // pred_check
          %p720 = pneg %p719
        $region58: #{tpu_custom_call.1} parent=39 // pred_check_branch
          %722 = sbr.rel (%p720) target = $region60
        $region59: #{tpu_custom_call.1} parent=39 // pred_region
          %v723 = vld [vmem:[%s4] sm:$0x1]
          %vm724 = vcmp.gt.f32.partialorder %v723, 0.0
          %v725 = vsel %vm724, %v707, -1e+30
          %vm726 = vcmask 1040384
          %v727 = vsel %vm726, %v725, -inf
          %728 = vmax.xlane.f32.xlu0 %v727
          %v729 = vpop.xlane.xlu0 %728
          %v730 = vsub.f32 %v725, %v729
          %v731 = vmul.f32 %v730, 1.442695
          %v732 = vpow.pop %v731
          %v733 = vsel %vm726, %v732, 0.0
          %734 = vadd.xlane.f32.xlu0 %v733
          %v735 = vpop.xlane.xlu0 %734
          %v736 = vrcp.pop %v735
          %v737 = vmul.f32 %v732, %v736
          %738 = vst [vmem:[#allocation8] sm:$0x1] %v737
        $region60: #{tpu_custom_call.1} parent=39 // pred_fallthru
          _
        // Predicated region
        $region61: #{tpu_custom_call.1} parent=39 // pred_check
          %p739 = pneg %p156
        $region62: #{tpu_custom_call.1} parent=39 // pred_check_branch
          %741 = sbr.rel (%p739) target = $region64
        $region63: #{tpu_custom_call.1} parent=39 // pred_region
          %s743 = ssub.s32 16, 16
          %744 = vsyncadd [#allocation5], %s743
          %s746 = sshll.u32 [#allocation8], 4
          %s747 = int_to_ptr.vmem [resolvable:$true] %s746
          %749 = dma.vmem_to_hbm [thread:$0]  %s747, 16, %s5, [#allocation5]
        $region64: #{tpu_custom_call.1} parent=39 // pred_fallthru
          _
        // Predicated region
        $region65: #{tpu_custom_call.1} parent=39 // pred_check
          %p750 = pneg %p156
        $region66: #{tpu_custom_call.1} parent=39 // pred_check_branch
          %752 = sbr.rel (%p750) target = $region68
        $region67: #{tpu_custom_call.1} parent=39 // pred_region
          %753 = dma.done [#allocation5], 16
        $region68: #{tpu_custom_call.1} parent=39 // pred_fallthru
          _
      $region40: #{tpu_custom_call.1} parent=5 // pred_fallthru
        _
      %p754 = scmp.le.s32.totalorder 2, %s18
      // Predicated region
      $region69: #{tpu_custom_call.1} parent=5 // pred_check
        %p755 = pneg %p754
      $region70: #{tpu_custom_call.1} parent=5 // pred_check_branch
        %757 = sbr.rel (%p755) target = $region72
      $region71: #{tpu_custom_call.1} parent=5 // pred_region
        %s758 = ssub.s32 %s18, 2
      $region72: #{tpu_custom_call.1} parent=5 // pred_fallthru
        _
    $region6: #{tpu_custom_call.1} parent=1 // loop_footer
      %s22 = sadd.s32 1, %s18
    $region7: #{tpu_custom_call.1} parent=1 // loop_footer_branch
      %17 = sbr.rel target = $region3
    $region8: #{tpu_custom_call.1} parent=1 // loop_exit
      _
    %759 = vsyncpa [#allocation4], 1
    %s760 = scalar_lea.sflag [#allocation4], 1
    %761 = vsyncpa %s760, 1
    %762 = vsyncpa [#allocation7], 1
    %s763 = scalar_lea.sflag [#allocation7], 1
    %764 = vsyncpa %s763, 1
    %765 = vsyncpa [#allocation5], 1
    %s766 = scalar_lea.sflag [#allocation5], 1
    %767 = vsyncpa %s766, 1

</llo_original>
